<compile_context>
chip_gen: v6e
topology: v6e:2x2x1
jax: 0.10.0
libtpu: 0.0.40
codegen_flags: <defaults>
</compile_context>

<pallas_src>
import functools

import jax
import jax.numpy as jnp
import numpy as np
from jax.experimental import pallas as pl
from jax.experimental.pallas import tpu as pltpu

NEG_INF = -1e30          # finite mask value: avoids NaN (inf - inf) in blocked softmax
VMEM_LIMIT = 48 * 1024 * 1024


def _sublane_align(dtype):
    """Native TPU sublane packing: 8 for 4-byte, 16 for 2-byte, 32 for 1-byte dtypes."""
    return max(8, 32 // max(1, jnp.dtype(dtype).itemsize))


def _pick_tile(dim, target, align):
    """Largest tile <= target that divides `dim` and is a multiple of `align`.

    Falls back to the full dim (always legal: full-extent blocks are exempt from
    the (8,128) divisibility rule)."""
    if dim <= target:
        return dim
    t = (target // align) * align
    while t >= align:
        if dim % t == 0:
            return t
        t -= align
    return dim


def _rope_rotation_matrix(D):
    """D x D matrix R with rotate_half(x) == x @ R (signed half-swap permutation)."""
    R = np.zeros((D, D), np.float32)
    h = D // 2
    for j in range(h):
        R[j + h, j] = -1.0
    for j in range(h, D):
        R[j - h, j] = 1.0
    return jnp.asarray(R)


# ---------------------------------------------------------------------------
# Kernels
# ---------------------------------------------------------------------------
def norm_matmul_kernel(x_ref, ln_ref, w_ref, o_ref, xn_ref, *, eps):
    """o = rmsnorm(x) @ W; the normalized row block is cached in VMEM at j==0."""
    @pl.when(pl.program_id(1) == 0)
    def _():
        x = x_ref[...].astype(jnp.float32)
        var = jnp.mean(x * x, axis=-1, keepdims=True)
        xn = x * jax.lax.rsqrt(var + eps) * ln_ref[...].astype(jnp.float32)
        xn_ref[...] = xn.astype(xn_ref.dtype)          # cast once for the MXU

    o_ref[...] = jnp.dot(
        xn_ref[...], w_ref[...], preferred_element_type=jnp.float32
    ).astype(o_ref.dtype)


def norm_gateup_kernel(x_ref, ln_ref, wg_ref, wu_ref, o_ref, xn_ref, *, eps):
    """o = silu(rmsnorm(x) @ Wg) * (rmsnorm(x) @ Wu); norm cached like above."""
    @pl.when(pl.program_id(1) == 0)
    def _():
        x = x_ref[...].astype(jnp.float32)
        var = jnp.mean(x * x, axis=-1, keepdims=True)
        xn = x * jax.lax.rsqrt(var + eps) * ln_ref[...].astype(jnp.float32)
        xn_ref[...] = xn.astype(xn_ref.dtype)

    xn = xn_ref[...]
    g = jnp.dot(xn, wg_ref[...], preferred_element_type=jnp.float32)
    u = jnp.dot(xn, wu_ref[...], preferred_element_type=jnp.float32)
    o_ref[...] = (g * jax.nn.sigmoid(g) * u).astype(o_ref.dtype)


def residual_matmul_kernel(a_ref, b_ref, res_ref, o_ref, acc_ref):
    """o = res + a @ b  with K tiled (innermost grid axis) and f32 accumulator."""
    k = pl.program_id(2)

    @pl.when(k == 0)
    def _():
        acc_ref[...] = jnp.zeros_like(acc_ref)

    acc_ref[...] += jnp.dot(a_ref[...], b_ref[...], preferred_element_type=jnp.float32)

    @pl.when(k == pl.num_programs(2) - 1)
    def _():
        o_ref[...] = (acc_ref[...] + res_ref[...].astype(jnp.float32)).astype(o_ref.dtype)


def flash_attn_kernel(cos_ref, sin_ref, rot_ref, q_ref, k_ref, v_ref, o_ref,
                      krot_ref, *, tq, G):
    """Causal flash attention for one (batch, kv-head, q-tile).

    All G = n_rep query heads sharing this KV head are handled in one step; the
    KV dimension is an in-kernel fori_loop over valid tiles only (tkv == tq)."""
    qi = pl.program_id(2)
    D = q_ref.shape[-1]
    rot = rot_ref[...]                                   # (D, D) f32 half-swap matrix

    def rope(x, cos, sin):
        # rotate_half(x) == x @ rot  (MXU does the lane half-swap for free)
        xr = jax.lax.dot_general(x, rot, (((x.ndim - 1,), (0,)), ((), ())),
                                 preferred_element_type=jnp.float32)
        return x * cos + xr * sin

    # RoPE'd K cached in VMEM.  The K block only changes when (b, kv_head) changes,
    # and qi is an unsharded ("arbitrary") axis that restarts at 0 for each of them.
    @pl.when(qi == 0)
    def _():
        kf = k_ref[0, 0].astype(jnp.float32)             # (T, D)
        krot_ref[...] = rope(kf, cos_ref[...], sin_ref[...]).astype(krot_ref.dtype)

    q_start = pl.multiple_of(qi * tq, 8)
    cos_q = cos_ref[pl.ds(q_start, tq), :]
    sin_q = sin_ref[pl.ds(q_start, tq), :]
    q = q_ref[0].astype(jnp.float32)                     # (G, tq, D)
    q = rope(q, cos_q, sin_q)                            # 1/sqrt(D) already in Wq
    q = q.reshape(G * tq, D).astype(krot_ref.dtype)

    def attend(j, m, l, acc, *, masked):
        start = pl.multiple_of(j * tq, 8)
        k_t = krot_ref[pl.ds(start, tq), :]              # (tq, D)
        v_t = v_ref[0, 0, pl.ds(start, tq), :]           # (tq, D)
        s = jax.lax.dot_general(q, k_t, (((1,), (1,)), ((), ())),
                                preferred_element_type=jnp.float32)   # (G*tq, tq)
        if masked:   # only the diagonal tile pays for the iota/compare/where
            row = jax.lax.broadcasted_iota(jnp.int32, s.shape, 0) % tq
            col = jax.lax.broadcasted_iota(jnp.int32, s.shape, 1)
            s = jnp.where(col <= row, s, NEG_INF)
        m_new = jnp.maximum(m, jnp.max(s, axis=-1, keepdims=True))
        alpha = jnp.exp(m - m_new)
        p = jnp.exp(s - m_new)
        l = alpha * l + jnp.sum(p, axis=-1, keepdims=True)
        acc = alpha * acc + jnp.dot(p.astype(v_t.dtype), v_t,
                                    preferred_element_type=jnp.float32)
        return m_new, l, acc

    rows = G * tq
    m0 = jnp.full((rows, 1), NEG_INF, jnp.float32)
    l0 = jnp.zeros((rows, 1), jnp.float32)
    a0 = jnp.zeros((rows, D), jnp.float32)

    # Interior (fully-below-diagonal) KV tiles: j in [0, qi) — unmasked.
    m, l, acc = jax.lax.fori_loop(
        0, qi, lambda j, c: attend(j, *c, masked=False), (m0, l0, a0))
    # Diagonal tile j == qi — causal mask applied here only.
    m, l, acc = attend(qi, m, l, acc, masked=True)

    out = acc * pl.reciprocal(l, approx=True)
    o_ref[...] = out.reshape(1, G, tq, D).astype(o_ref.dtype)


# ---------------------------------------------------------------------------
# Pallas wrappers (tiled grids)
# ---------------------------------------------------------------------------
def fused_norm_matmul(x2d, ln_w, w, *, eps=1e-5, tm_target=256, tn_target=512):
    M, C = x2d.shape
    N = w.shape[1]
    tm = _pick_tile(M, tm_target, _sublane_align(x2d.dtype))
    tn = _pick_tile(N, tn_target, 128)
    return pl.pallas_call(
        functools.partial(norm_matmul_kernel, eps=eps),
        out_shape=jax.ShapeDtypeStruct((M, N), x2d.dtype),
        grid=(M // tm, N // tn),
        in_specs=[
            pl.BlockSpec((tm, C), lambda i, j: (i, 0)),   # x row block, reused over j
            pl.BlockSpec((1, C), lambda i, j: (0, 0)),
            pl.BlockSpec((C, tn), lambda i, j: (0, j)),
        ],
        out_specs=pl.BlockSpec((tm, tn), lambda i, j: (i, j)),
        scratch_shapes=[pltpu.VMEM((tm, C), w.dtype)],    # cached normalized x
        compiler_params=pltpu.CompilerParams(
            dimension_semantics=("parallel", "arbitrary"),  # j arbitrary: scratch reuse
            vmem_limit_bytes=VMEM_LIMIT),
    )(x2d, ln_w.reshape(1, C), w)


def fused_norm_gateup(x2d, ln_w, wg, wu, *, eps=1e-5, tm_target=256, tn_target=512):
    M, C = x2d.shape
    I = wg.shape[1]
    tm = _pick_tile(M, tm_target, _sublane_align(x2d.dtype))
    tn = _pick_tile(I, tn_target, 128)
    return pl.pallas_call(
        functools.partial(norm_gateup_kernel, eps=eps),
        out_shape=jax.ShapeDtypeStruct((M, I), x2d.dtype),
        grid=(M // tm, I // tn),
        in_specs=[
            pl.BlockSpec((tm, C), lambda i, j: (i, 0)),
            pl.BlockSpec((1, C), lambda i, j: (0, 0)),
            pl.BlockSpec((C, tn), lambda i, j: (0, j)),
            pl.BlockSpec((C, tn), lambda i, j: (0, j)),
        ],
        out_specs=pl.BlockSpec((tm, tn), lambda i, j: (i, j)),
        scratch_shapes=[pltpu.VMEM((tm, C), wg.dtype)],
        compiler_params=pltpu.CompilerParams(
            dimension_semantics=("parallel", "arbitrary"),
            vmem_limit_bytes=VMEM_LIMIT),
    )(x2d, ln_w.reshape(1, C), wg, wu)


def residual_matmul(a, b, res, *, tm_target=256, tn_target=512, tk_target=1024):
    """res + a @ b  with the contraction dim tiled as the innermost grid axis."""
    M, K = a.shape
    N = b.shape[1]
    tm = _pick_tile(M, tm_target, _sublane_align(a.dtype))
    tn = _pick_tile(N, tn_target, 128)
    tk = _pick_tile(K, tk_target, 128)
    return pl.pallas_call(
        residual_matmul_kernel,
        out_shape=jax.ShapeDtypeStruct((M, N), res.dtype),
        grid=(M // tm, N // tn, K // tk),
        in_specs=[
            pl.BlockSpec((tm, tk), lambda i, j, k: (i, k)),
            pl.BlockSpec((tk, tn), lambda i, j, k: (k, j)),
            pl.BlockSpec((tm, tn), lambda i, j, k: (i, j)),
        ],
        out_specs=pl.BlockSpec((tm, tn), lambda i, j, k: (i, j)),
        scratch_shapes=[pltpu.VMEM((tm, tn), jnp.float32)],
        compiler_params=pltpu.CompilerParams(
            dimension_semantics=("parallel", "parallel", "arbitrary"),
            vmem_limit_bytes=VMEM_LIMIT),
    )(a, b, res)


def flash_attention(q, k, v, cos_p, sin_p, *, n_rep, tq_target=512):
    """q: (B,H,T,D); k,v: (B,Hkv,T,D); cos/sin: (T,D) already gathered by position_ids.

    Grid is (B, Hkv, T//tq); each step handles the n_rep query heads sharing one
    KV head and loops over the valid (causal) KV tiles in-kernel."""
    B, H, T, D = q.shape
    Hkv = k.shape[1]
    assert H == Hkv * n_rep
    G = n_rep
    tq = _pick_tile(T, tq_target, _sublane_align(q.dtype))
    rot = _rope_rotation_matrix(D)

    return pl.pallas_call(
        functools.partial(flash_attn_kernel, tq=tq, G=G),
        out_shape=jax.ShapeDtypeStruct((B, H, T, D), q.dtype),
        grid=(B, Hkv, T // tq),
        in_specs=[
            pl.BlockSpec((T, D), lambda b, h, qi: (0, 0)),            # cos
            pl.BlockSpec((T, D), lambda b, h, qi: (0, 0)),            # sin
            pl.BlockSpec((D, D), lambda b, h, qi: (0, 0)),            # rotate_half matrix
            pl.BlockSpec((1, G, tq, D), lambda b, h, qi: (b, h, qi, 0)),  # q (G heads)
            pl.BlockSpec((1, 1, T, D), lambda b, h, qi: (b, h, 0, 0)),    # k (full T)
            pl.BlockSpec((1, 1, T, D), lambda b, h, qi: (b, h, 0, 0)),    # v (full T)
        ],
        out_specs=pl.BlockSpec((1, G, tq, D), lambda b, h, qi: (b, h, qi, 0)),
        scratch_shapes=[pltpu.VMEM((T, D), k.dtype)],   # RoPE'd K cache
        compiler_params=pltpu.CompilerParams(
            dimension_semantics=("parallel", "parallel", "arbitrary"),
            vmem_limit_bytes=VMEM_LIMIT),
    )(cos_p, sin_p, rot, q, k, v)


# ---------------------------------------------------------------------------
# JAX glue: RoPE tables, parameter init, full Block forward
# ---------------------------------------------------------------------------
def rope_cos_sin(head_dim, max_pos, base=10000.0):
    inv_freq = 1.0 / (base ** (jnp.arange(0, head_dim, 2, dtype=jnp.float32) / head_dim))
    t = jnp.arange(max_pos, dtype=jnp.float32)
    freqs = jnp.einsum("i,j->ij", t, inv_freq)
    emb = jnp.concatenate([freqs, freqs], axis=-1)
    return jnp.cos(emb), jnp.sin(emb)


def rotate_half(x):
    h = x.shape[-1] // 2
    return jnp.concatenate([-x[..., h:], x[..., :h]], axis=-1)


def apply_rope(q, k, cos, sin, position_ids):
    cos = cos[position_ids][None, None]  # (1, 1, T, D)
    sin = sin[position_ids][None, None]
    return q * cos + rotate_half(q) * sin, k * cos + rotate_half(k) * sin


def init_params(key, n_embd, n_head, n_kv_head, intermediate, max_pos):
    D = n_embd // n_head
    ks = jax.random.split(key, 7)
    s = 0.02
    p = {
        "ln1_w": jnp.ones((n_embd,), jnp.float32),
        "ln2_w": jnp.ones((n_embd,), jnp.float32),
        "wq": jax.random.normal(ks[0], (n_embd, n_head * D), jnp.float32) * s,
        "wk": jax.random.normal(ks[1], (n_embd, n_kv_head * D), jnp.float32) * s,
        "wv": jax.random.normal(ks[2], (n_embd, n_kv_head * D), jnp.float32) * s,
        "wo": jax.random.normal(ks[3], (n_head * D, n_embd), jnp.float32) * s,
        "wg": jax.random.normal(ks[4], (n_embd, intermediate), jnp.float32) * s,
        "wu": jax.random.normal(ks[5], (n_embd, intermediate), jnp.float32) * s,
        "wd": jax.random.normal(ks[6], (intermediate, n_embd), jnp.float32) * s,
    }
    # Fused QKV weight; the 1/sqrt(D) attention scale is folded into the Q columns
    # (RoPE is linear, so pre-scaling q commutes with the rotation).
    scale = 1.0 / (D ** 0.5)
    p["wqkv"] = jnp.concatenate([p["wq"] * scale, p["wk"], p["wv"]], axis=1)
    cos, sin = rope_cos_sin(D, max_pos)
    p["cos_cached"] = cos
    p["sin_cached"] = sin
    return p


def block_forward(params, x, position_ids, n_head, n_kv_head, eps=1e-5,
                  attn_tq_target=512):
    B, T, C = x.shape
    D = C // n_head
    n_rep = n_head // n_kv_head
    M = B * T
    x2d = x.reshape(M, C)

    # --- x = x + attn(input_layernorm(x)) ---
    qkv = fused_norm_matmul(x2d, params["ln1_w"], params["wqkv"], eps=eps)
    qd, kd = n_head * D, n_kv_head * D
    q = qkv[:, :qd].reshape(B, T, n_head, D).transpose(0, 2, 1, 3)
    k = qkv[:, qd:qd + kd].reshape(B, T, n_kv_head, D).transpose(0, 2, 1, 3)
    v = qkv[:, qd + kd:].reshape(B, T, n_kv_head, D).transpose(0, 2, 1, 3)

    # RoPE itself is fused into the attention kernel; only the tiny gather stays here.
    cos_p = params["cos_cached"][position_ids]   # (T, D)
    sin_p = params["sin_cached"][position_ids]

    y = flash_attention(q, k, v, cos_p, sin_p, n_rep=n_rep,
                        tq_target=attn_tq_target)          # (B, H, T, D)
    y2d = y.transpose(0, 2, 1, 3).reshape(M, C)
    x2d = residual_matmul(y2d, params["wo"], x2d)           # x + attn_out (fused)

    # --- x = x + mlp(post_attention_layernorm(x)) ---
    h = fused_norm_gateup(x2d, params["ln2_w"], params["wg"], params["wu"], eps=eps)
    x2d = residual_matmul(h, params["wd"], x2d)             # x + mlp_out (fused)
    return x2d.reshape(B, T, C)


# ---------------------------------------------------------------------------
# Pure-JAX reference (mirrors the PyTorch math) for a sanity check
# ---------------------------------------------------------------------------
def ref_block(params, x, position_ids, n_head, n_kv_head, eps=1e-5):
    B, T, C = x.shape
    D = C // n_head
    n_rep = n_head // n_kv_head

    def rms(z, w):
        zf = z.astype(jnp.float32)
        return zf * jax.lax.rsqrt(jnp.mean(zf * zf, -1, keepdims=True) + eps) * w

    h = rms(x, params["ln1_w"])
    q = (h @ params["wq"]).reshape(B, T, n_head, D).transpose(0, 2, 1, 3)
    k = (h @ params["wk"]).reshape(B, T, n_kv_head, D).transpose(0, 2, 1, 3)
    v = (h @ params["wv"]).reshape(B, T, n_kv_head, D).transpose(0, 2, 1, 3)
    q, k = apply_rope(q, k, params["cos_cached"][:T], params["sin_cached"][:T], position_ids)
    k = jnp.repeat(k, n_rep, axis=1)
    v = jnp.repeat(v, n_rep, axis=1)
    s = jnp.einsum("bhqd,bhkd->bhqk", q, k) / (D ** 0.5)
    mask = jnp.tril(jnp.ones((T, T), bool))
    s = jnp.where(mask[None, None], s, -jnp.inf)
    p = jax.nn.softmax(s, axis=-1)
    y = jnp.einsum("bhqk,bhkd->bhqd", p, v)
    y = y.transpose(0, 2, 1, 3).reshape(B, T, C)
    x = x + y @ params["wo"]
    h = rms(x, params["ln2_w"])
    g = h @ params["wg"]
    mlp_out = (jax.nn.silu(g) * (h @ params["wu"])) @ params["wd"]
    return x + mlp_out


# ---------------------------------------------------------------------------
if __name__ == "__main__":
    # Small config consistent with the module (T=16 so the multi-q-tile attention
    # path, the in-kernel KV loop, and the cached-K RoPE reuse are all exercised).
    B, T = 2, 16
    n_embd, n_head, n_kv_head = 32, 4, 2
    intermediate_size = 64
    sequence_length = 16  # max_position_embeddings for the rotary cache

    key = jax.random.PRNGKey(0)
    k_param, k_x = jax.random.split(key)
    params = init_params(k_param, n_embd, n_head, n_kv_head, intermediate_size,
                         sequence_length)

    x = jax.random.normal(k_x, (B, T, n_embd), jnp.float32)
    position_ids = jnp.arange(T, dtype=jnp.int32)

    out = block_forward(params, x, position_ids, n_head, n_kv_head,
                        attn_tq_target=8)   # force 2 q tiles at this tiny T
    out = jax.block_until_ready(out)

    ref = ref_block(params, x, position_ids, n_head, n_kv_head)
    np.testing.assert_allclose(np.asarray(out), np.asarray(ref), rtol=2e-3, atol=2e-3)

    print("KERNEL_OK")
</pallas_src>

<mosaic_0001>
module attributes {stable_mosaic.version = 11 : i64} {
  func.func @norm_matmul_kernel(%arg0: i32, %arg1: i32, %arg2: memref<32x32xf32, #tpu.memory_space<vmem>>, %arg3: memref<1x32xf32, #tpu.memory_space<vmem>>, %arg4: memref<32x64xf32, #tpu.memory_space<vmem>>, %arg5: memref<32x64xf32, #tpu.memory_space<vmem>>, %arg6: memref<32x32xf32, #tpu.memory_space<vmem>>) attributes {dimension_semantics = [#tpu.dimension_semantics<parallel>, #tpu.dimension_semantics<arbitrary>], iteration_bounds = array<i64: 1, 1>, scalar_prefetch = 0 : i64, scratch_operands = 1 : i64, tpu.core_type = #tpu.core_type<tc>, window_params = [{transform_indices = @transform_0, window_bounds = array<i64: 32, 32>}, {pipeline_mode = #tpu.pipeline_mode<synchronous>, transform_indices = @transform_1, window_bounds = array<i64: 1, 32>}, {transform_indices = @transform_2, window_bounds = array<i64: 32, 64>}, {transform_indices = @transform_3, window_bounds = array<i64: 32, 64>}]} {
    %c0_i32 = arith.constant 0 : i32
    %0 = arith.cmpi eq, %arg1, %c0_i32 : i32
    %1 = arith.extui %0 : i1 to i32
    %c0_i32_0 = arith.constant 0 : i32
    %2 = arith.cmpi ne, %1, %c0_i32_0 : i32
    scf.if %2 {
      %c0_6 = arith.constant 0 : index
      %c0_7 = arith.constant 0 : index
      %7 = vector.load %arg2[%c0_6, %c0_7] : memref<32x32xf32, #tpu.memory_space<vmem>>, vector<32x32xf32>
      %8 = arith.mulf %7, %7 : vector<32x32xf32>
      %cst_8 = arith.constant dense<0.000000e+00> : vector<32xf32>
      %9 = vector.multi_reduction <add>, %8, %cst_8 [1] : vector<32x32xf32> to vector<32xf32>
      %10 = vector.shape_cast %9 : vector<32xf32> to vector<32x1xf32>
      %cst_9 = arith.constant 3.200000e+01 : f32
      %11 = vector.broadcast %cst_9 : f32 to vector<32x1xf32>
      %12 = arith.divf %10, %11 : vector<32x1xf32>
      %cst_10 = arith.constant 9.99999974E-6 : f32
      %13 = vector.broadcast %cst_10 : f32 to vector<32x1xf32>
      %14 = arith.addf %12, %13 : vector<32x1xf32>
      %15 = math.rsqrt %14 : vector<32x1xf32>
      %16 = vector.broadcast %15 : vector<32x1xf32> to vector<32x32xf32>
      %17 = arith.mulf %7, %16 : vector<32x32xf32>
      %c0_11 = arith.constant 0 : index
      %c0_12 = arith.constant 0 : index
      %18 = vector.load %arg3[%c0_11, %c0_12] : memref<1x32xf32, #tpu.memory_space<vmem>>, vector<1x32xf32>
      %19 = vector.broadcast %18 : vector<1x32xf32> to vector<32x32xf32>
      %20 = arith.mulf %17, %19 : vector<32x32xf32>
      %c0_13 = arith.constant 0 : index
      %c0_14 = arith.constant 0 : index
      %21 = vector.load %arg6[%c0_13, %c0_14] : memref<32x32xf32, #tpu.memory_space<vmem>>, vector<32x32xf32>
      tpu.vector_store %arg6[%c0_13, %c0_14], %20 {strides = array<i32>} : memref<32x32xf32, #tpu.memory_space<vmem>>, vector<32x32xf32>,
    } else {
    }
    %c0 = arith.constant 0 : index
    %c0_1 = arith.constant 0 : index
    %3 = vector.load %arg6[%c0, %c0_1] : memref<32x32xf32, #tpu.memory_space<vmem>>, vector<32x32xf32>
    %c0_2 = arith.constant 0 : index
    %c0_3 = arith.constant 0 : index
    %4 = vector.load %arg4[%c0_2, %c0_3] : memref<32x64xf32, #tpu.memory_space<vmem>>, vector<32x64xf32>
    %cst = arith.constant dense<0.000000e+00> : vector<32x64xf32>
    %5 = tpu.matmul %3, %4, %cst {dimension_numbers = #tpu.dot_dimension_numbers<[1], [0], [0], [1], [0, 0, 1, 1], [], []>} : vector<32x32xf32>, vector<32x64xf32>, vector<32x64xf32> -> vector<32x64xf32>
    %c0_4 = arith.constant 0 : index
    %c0_5 = arith.constant 0 : index
    %6 = vector.load %arg5[%c0_4, %c0_5] : memref<32x64xf32, #tpu.memory_space<vmem>>, vector<32x64xf32>
    tpu.vector_store %arg5[%c0_4, %c0_5], %5 {strides = array<i32>} : memref<32x64xf32, #tpu.memory_space<vmem>>, vector<32x64xf32>,
    return
  }
  func.func @transform_0(%arg0: i32, %arg1: i32) -> (i32, i32) {
    %c0_i32 = arith.constant 0 : i32
    %c0_i32_0 = arith.constant 0 : i32
    return %arg0, %c0_i32 : i32, i32
  }
  func.func @transform_1(%arg0: i32, %arg1: i32) -> (i32, i32) {
    %c0_i32 = arith.constant 0 : i32
    %c0_i32_0 = arith.constant 0 : i32
    %c0_i32_1 = arith.constant 0 : i32
    return %c0_i32, %c0_i32_0 : i32, i32
  }
  func.func @transform_2(%arg0: i32, %arg1: i32) -> (i32, i32) {
    %c0_i32 = arith.constant 0 : i32
    %c0_i32_0 = arith.constant 0 : i32
    return %c0_i32, %arg1 : i32, i32
  }
  func.func @transform_3(%arg0: i32, %arg1: i32) -> (i32, i32) {
    %c0_i32 = arith.constant 0 : i32
    return %arg0, %arg1 : i32, i32
  }
}

</mosaic_0001>

<llo_original>
// kernel: tpu_custom_call.1
$region0: #{tpu_custom_call.1}
  #allocation0 [shape = 'u32[]', space=smem, size = 0x4, offset = 0x4, fixed_abs, tag = 'smem constant byte address 0x4 - core index']
  #allocation1 [shape = 'u32[144,128]{1,0:T(1,128)}', space=vmem, size = 0x12000, scoped, tag = 'internal scratch']
  #allocation2 [shape = 'f32[32,32]{1,0:T(8,128)}', space=vmem, size = 0x4000, scoped, tag = 'scratch operand']
  %s0 = inlined_call_operand.hbm [shape: f32[32,32], index: 0, kind: input, shape index: {}]
  %s1 = inlined_call_operand.vmem [shape: f32[1,32], index: 1, kind: input, shape index: {}]
  %s2 = inlined_call_operand.hbm [shape: f32[32,64], index: 2, kind: input, shape index: {}]
  %s3 = inlined_call_operand.hbm [shape: f32[32,64], index: 3, kind: output, shape index: {}]
  %s4 = sld [smem:[#allocation0]]
  $region34: #{tpu_custom_call.1} parent=0
    _
  %s6 = ssub.s32 1, %s4
  %s7 = scalar_select 0, %s6, %s4
  $region1: #{tpu_custom_call.1} parent=0
    #allocation3 [shape = 'u8[16384]{0}', space=vmem, size = 0x4000, scoped, tag = 'input window, operand 0, single buffered']
    #allocation4 [shape = 's32[1]{0}', space=sflag, size = 0x4, scoped, tag = 'scoped memory for tpu_custom_call.1']
    #allocation5 [shape = 's32[1]{0}', space=sflag, size = 0x4, scoped, tag = 'scoped memory for tpu_custom_call.1']
    #allocation6 [shape = 'u8[16384]{0}', space=vmem, size = 0x4000, scoped, tag = 'input window, operand 2, single buffered']
    #allocation7 [shape = 's32[1]{0}', space=sflag, size = 0x4, scoped, tag = 'scoped memory for tpu_custom_call.1']
    #allocation8 [shape = 'u8[16384]{0}', space=vmem, size = 0x4000, scoped, tag = 'output window, operand 0, single buffered']
    %8 = vsyncpa [#allocation4], 0
    %9 = vsyncpa [#allocation7], 0
    %10 = vsyncpa [#allocation5], 0
    // Predicated region
    $region2: #{tpu_custom_call.1} parent=1 // pred_check
      _
    $region3: #{tpu_custom_call.1} parent=1 // pred_check_branch
      %12 = sbr.rel (0) target = $region5
    $region4: #{tpu_custom_call.1} parent=1 // pred_region
      %s14 = ssub.s32 512, 512
      %15 = vsyncadd [#allocation4], %s14
      %s16 = sshll.u32 [#allocation3], 4
      %s17 = int_to_ptr.vmem [resolvable:$true] %s16
      %22 = dma.hbm_to_vmem [thread:$0]  %s0, 512, %s17, [#allocation4], 128, 128, 8
    $region5: #{tpu_custom_call.1} parent=1 // pred_fallthru
      _
    // Predicated region
    $region6: #{tpu_custom_call.1} parent=1 // pred_check
      _
    $region7: #{tpu_custom_call.1} parent=1 // pred_check_branch
      %24 = sbr.rel (0) target = $region9
    $region8: #{tpu_custom_call.1} parent=1 // pred_region
      _
    $region9: #{tpu_custom_call.1} parent=1 // pred_fallthru
      _
    // Predicated region
    $region10: #{tpu_custom_call.1} parent=1 // pred_check
      _
    $region11: #{tpu_custom_call.1} parent=1 // pred_check_branch
      %26 = sbr.rel (0) target = $region13
    $region12: #{tpu_custom_call.1} parent=1 // pred_region
      %s28 = ssub.s32 512, 512
      %29 = vsyncadd [#allocation7], %s28
      %s30 = sshll.u32 [#allocation6], 4
      %s31 = int_to_ptr.vmem [resolvable:$true] %s30
      %36 = dma.hbm_to_vmem [thread:$0]  %s2, 512, %s31, [#allocation7], 128, 128, 8
    $region13: #{tpu_custom_call.1} parent=1 // pred_fallthru
      _
    // Predicated region
    $region14: #{tpu_custom_call.1} parent=1 // pred_check
      _
    $region15: #{tpu_custom_call.1} parent=1 // pred_check_branch
      %38 = sbr.rel (0) target = $region17
    $region16: #{tpu_custom_call.1} parent=1 // pred_region
      %39 = dma.done [#allocation4], 512
    $region17: #{tpu_custom_call.1} parent=1 // pred_fallthru
      _
    // Predicated region
    $region18: #{tpu_custom_call.1} parent=1 // pred_check
      _
    $region19: #{tpu_custom_call.1} parent=1 // pred_check_branch
      %41 = sbr.rel (0) target = $region21
    $region20: #{tpu_custom_call.1} parent=1 // pred_region
      %42 = dma.done [#allocation7], 512
    $region21: #{tpu_custom_call.1} parent=1 // pred_fallthru
      _
    %p43 = scmp.eq.s32.totalorder 0, 0
    // Predicated region
    $region22: #{tpu_custom_call.1} parent=1 // pred_check
      %p44 = pneg %p43
    $region23: #{tpu_custom_call.1} parent=1 // pred_check_branch
      %46 = sbr.rel (%p44) target = $region25
    $region24: #{tpu_custom_call.1} parent=1 // pred_region
      %v47 = vld [vmem:[#allocation3] sm:$0xff]
      %v48 = vld [vmem:[#allocation3 + $0x8] sm:$0xff]
      %v49 = vld [vmem:[#allocation3 + $0x10] sm:$0xff]
      %v50 = vld [vmem:[#allocation3 + $0x18] sm:$0xff]
      %v51 = vmul.f32 %v47, %v47
      %v52 = vmul.f32 %v48, %v48
      %v53 = vmul.f32 %v49, %v49
      %v54 = vmul.f32 %v50, %v50
      %vm55 = vcmask 261120
      %v56 = vsel %vm55, %v51, 0.0
      %57 = vadd.xlane.f32.xlu0 %v56
      %v58 = vpop.xlane.xlu0 %57
      %v59 = vsel %vm55, %v52, 0.0
      %60 = vadd.xlane.f32.xlu0 %v59
      %v61 = vpop.xlane.xlu0 %60
      %v62 = vsel %vm55, %v53, 0.0
      %63 = vadd.xlane.f32.xlu0 %v62
      %v64 = vpop.xlane.xlu0 %63
      %v65 = vsel %vm55, %v54, 0.0
      %66 = vadd.xlane.f32.xlu0 %v65
      %v67 = vpop.xlane.xlu0 %66
      %v68 = vrcp.pop 32.0
      %v69 = vmul.f32 %v58, %v68
      %v70 = vmul.f32 %v61, %v68
      %v71 = vmul.f32 %v64, %v68
      %v72 = vmul.f32 %v67, %v68
      %v73 = vadd.f32 %v69, 1e-05
      %v74 = vadd.f32 %v70, 1e-05
      %v75 = vadd.f32 %v71, 1e-05
      %v76 = vadd.f32 %v72, 1e-05
      %v77 = vrsqrt.pop %v73
      %v78 = vrsqrt.pop %v74
      %v79 = vrsqrt.pop %v75
      %v80 = vrsqrt.pop %v76
      %v81 = vmul.f32 %v47, %v77
      %v82 = vmul.f32 %v48, %v78
      %v83 = vmul.f32 %v49, %v79
      %v84 = vmul.f32 %v50, %v80
      %v85 = vld [vmem:[%s1] sm:$0x1]
      %v87 = vlaneseq
      %v88 = vshrl.u32 %v87, 7
      %v89 = vsub.s32 0, %v88
      %v90 = vrot.slane %v85, %v89
      %v92 = vmul.f32 %v81, %v90
      %v93 = vmul.f32 %v82, %v90
      %v94 = vmul.f32 %v83, %v90
      %v95 = vmul.f32 %v84, %v90
      %96 = vst.msk [vmem:[#allocation2] sm:$0xff] %vm55, %v92
      %97 = vst.msk [vmem:[#allocation2 + $0x8] sm:$0xff] %vm55, %v93
      %98 = vst.msk [vmem:[#allocation2 + $0x10] sm:$0xff] %vm55, %v94
      %99 = vst.msk [vmem:[#allocation2 + $0x18] sm:$0xff] %vm55, %v95
    $region25: #{tpu_custom_call.1} parent=1 // pred_fallthru
      _
    %v100 = vld [vmem:[#allocation2] sm:$0xff]
    %v101 = vld [vmem:[#allocation2 + $0x8] sm:$0xff]
    %v102 = vld [vmem:[#allocation2 + $0x10] sm:$0xff]
    %v103 = vld [vmem:[#allocation2 + $0x18] sm:$0xff]
    %v104 = vld [vmem:[#allocation6] sm:$0xff]
    %v105 = vld [vmem:[#allocation6 + $0x8] sm:$0xff]
    %v106 = vld [vmem:[#allocation6 + $0x10] sm:$0xff]
    %v107 = vld [vmem:[#allocation6 + $0x18] sm:$0xff]
    %vm108 = vcmask 261120
    %v110 = vsel %vm108, %v100, 0
    %v113 = vsel %vm108, %v101, 0
    %v116 = vsel %vm108, %v102, 0
    %v119 = vsel %vm108, %v103, 0
    %121 = vmatprep.subr.mxu0 0.0
    %122 = vmatpush1.msra.mxu0 0.0
    %123 = vmatprep.subr.mxu0 0.0
    %124 = vmatpush1.msra.mxu0 0.0
    %125 = vmatprep.subr.mxu0 0.0
    %126 = vmatpush1.msra.mxu0 0.0
    %127 = vmatprep.subr.mxu0 0.0
    %128 = vmatpush1.msra.mxu0 0.0
    %129 = vmatprep.subr.mxu0 0.0
    %130 = vmatpush1.msra.mxu0 0.0
    %131 = vmatprep.subr.mxu0 0.0
    %132 = vmatpush1.msra.mxu0 0.0
    %133 = vmatprep.subr.mxu0 0.0
    %134 = vmatpush1.msra.mxu0 0.0
    %135 = vmatprep.subr.mxu0 0.0
    %136 = vmatpush1.msra.mxu0 0.0
    %137 = vmatprep.subr.mxu0 0.0
    %138 = vmatpush1.msra.mxu0 0.0
    %139 = vmatprep.subr.mxu0 0.0
    %140 = vmatpush1.msra.mxu0 0.0
    %141 = vmatprep.subr.mxu0 0.0
    %142 = vmatpush1.msra.mxu0 0.0
    %143 = vmatprep.subr.mxu0 0.0
    %144 = vmatpush1.msra.mxu0 0.0
    %145 = vmatprep.subr.mxu0 0.0
    %146 = vmatpush1.msra.mxu0 %v107
    %147 = vmatprep.subr.mxu0 0.0
    %148 = vmatpush1.msra.mxu0 %v106
    %149 = vmatprep.subr.mxu0 0.0
    %150 = vmatpush1.msra.mxu0 %v105
    %151 = vmatprep.subr.mxu0 0.0
    %152 = vmatpush1.msra.mxu0 %v104
    %153 = vmatprep.subr.mxu0 0.0
    %154 = vmatpush2.msra.mxu0 0.0
    %155 = vmatprep.subr.mxu0 0.0
    %156 = vmatpush2.msra.mxu0 0.0
    %157 = vmatprep.subr.mxu0 0.0
    %158 = vmatpush2.msra.mxu0 0.0
    %159 = vmatprep.subr.mxu0 0.0
    %160 = vmatpush2.msra.mxu0 0.0
    %161 = vmatprep.subr.mxu0 0.0
    %162 = vmatpush2.msra.mxu0 0.0
    %163 = vmatprep.subr.mxu0 0.0
    %164 = vmatpush2.msra.mxu0 0.0
    %165 = vmatprep.subr.mxu0 0.0
    %166 = vmatpush2.msra.mxu0 0.0
    %167 = vmatprep.subr.mxu0 0.0
    %168 = vmatpush2.msra.mxu0 0.0
    %169 = vmatprep.subr.mxu0 0.0
    %170 = vmatpush2.msra.mxu0 0.0
    %171 = vmatprep.subr.mxu0 0.0
    %172 = vmatpush2.msra.mxu0 0.0
    %173 = vmatprep.subr.mxu0 0.0
    %174 = vmatpush2.msra.mxu0 0.0
    %175 = vmatprep.subr.mxu0 0.0
    %176 = vmatpush2.msra.mxu0 0.0
    %177 = vmatprep.subr.mxu0 0.0
    %178 = vmatpush2.msra.mxu0 0.0
    %179 = vmatprep.subr.mxu0 0.0
    %180 = vmatpush2.msra.mxu0 0.0
    %181 = vmatprep.subr.mxu0 0.0
    %182 = vmatpush2.msra.mxu0 0.0
    %183 = vmatprep.subr.mxu0 0.0
    %184 = vmatpush2.msra.mxu0 0.0
    %185 = vmatprep.mubr.f32.mxu0 0.0
    %186 = vmatmul.mubr.f32.gmra.mxu0 %v110
    %v187 = vpop.f32.mrf.mxu0
    %v188 = vadd.f32 0.0, %v187
    %v189 = vpop.f32.mrf.mxu0
    %190 = vmatprep.mubr.f32.mxu0 0.0
    %191 = vmatmul.mubr.f32.gmra.mxu0 %v113
    %v192 = vpop.f32.mrf.mxu0
    %v193 = vadd.f32 0.0, %v192
    %v194 = vpop.f32.mrf.mxu0
    %195 = vmatprep.mubr.f32.mxu0 0.0
    %196 = vmatmul.mubr.f32.gmra.mxu0 %v116
    %v197 = vpop.f32.mrf.mxu0
    %v198 = vadd.f32 0.0, %v197
    %v199 = vpop.f32.mrf.mxu0
    %200 = vmatprep.mubr.f32.mxu0 0.0
    %201 = vmatmul.mubr.f32.gmra.mxu0 %v119
    %v202 = vpop.f32.mrf.mxu0
    %v203 = vadd.f32 0.0, %v202
    %v204 = vpop.f32.mrf.mxu0
    %205 = vdwg.mxu0
    %vm206 = vcmask 523264
    %207 = vst.msk [vmem:[#allocation8] sm:$0xff] %vm206, %v188
    %208 = vst.msk [vmem:[#allocation8 + $0x8] sm:$0xff] %vm206, %v193
    %209 = vst.msk [vmem:[#allocation8 + $0x10] sm:$0xff] %vm206, %v198
    %210 = vst.msk [vmem:[#allocation8 + $0x18] sm:$0xff] %vm206, %v203
    // Predicated region
    $region26: #{tpu_custom_call.1} parent=1 // pred_check
      _
    $region27: #{tpu_custom_call.1} parent=1 // pred_check_branch
      %212 = sbr.rel (0) target = $region29
    $region28: #{tpu_custom_call.1} parent=1 // pred_region
      %s214 = ssub.s32 512, 512
      %215 = vsyncadd [#allocation5], %s214
      %s216 = sshll.u32 [#allocation8], 4
      %s217 = int_to_ptr.vmem [resolvable:$true] %s216
      %222 = dma.vmem_to_hbm [thread:$0]  %s217, 512, %s3, [#allocation5], 128, 128, 8
    $region29: #{tpu_custom_call.1} parent=1 // pred_fallthru
      _
    // Predicated region
    $region30: #{tpu_custom_call.1} parent=1 // pred_check
      _
    $region31: #{tpu_custom_call.1} parent=1 // pred_check_branch
      %224 = sbr.rel (0) target = $region33
    $region32: #{tpu_custom_call.1} parent=1 // pred_region
      %225 = dma.done [#allocation5], 512
    $region33: #{tpu_custom_call.1} parent=1 // pred_fallthru
      _
    %226 = vsyncpa [#allocation4], 1
    %227 = vsyncpa [#allocation7], 1
    %228 = vsyncpa [#allocation5], 1

</llo_original>
